<compile_context>
chip_gen: v5e
topology: v5e:2x2
jax: 0.10.0
libtpu: 0.0.40
codegen_flags: <defaults>
</compile_context>

<pallas_src>
import functools

import jax
import jax.numpy as jnp
from jax.experimental import pallas as pl
from jax.experimental.pallas import tpu as pltpu


_LANES = 128            # vreg lane width: keep the last dim lane-dense
_MAX_TILE_ROWS = 4096   # 4096 x 128 f32 = 2 MiB / tile (4 MiB double-buffered)


# ---------------------------------------------------------------------------
# Per-element loss (shared by the kernel, the <128-element tail and the ref)
# ---------------------------------------------------------------------------

def _elementwise_loss(x, gan_type, target_val, sign):
    """Per-element GAN loss on f32 values."""
    if gan_type in ("gan", "ragan"):
        # BCEWithLogitsLoss vs a constant target y (numerically stable):
        #   softplus(x) - x*y  ==  max(x,0) - x*y + log(1 + exp(-|x|))
        # For y in {0, 1} this is softplus(-x) / softplus(x): one mul+sub saved.
        if target_val == 1.0:
            z = -x
            return jnp.maximum(z, 0.0) + jnp.log(1.0 + jnp.exp(-jnp.abs(z)))
        if target_val == 0.0:
            return jnp.maximum(x, 0.0) + jnp.log(1.0 + jnp.exp(-jnp.abs(x)))
        return (jnp.maximum(x, 0.0) - x * target_val
                + jnp.log(1.0 + jnp.exp(-jnp.abs(x))))
    if gan_type == "lsgan":
        d = x - target_val
        return d * d
    # 'wgan-gp':  -mean(x) if real else mean(x)   (mean taken by the caller)
    return sign * x


# ---------------------------------------------------------------------------
# Kernel: streaming partial-sum of the per-element loss into an (8,128) block
# ---------------------------------------------------------------------------

def _gan_partial_kernel(x_ref, o_ref, *, gan_type, target_val, sign,
                        rows, tile_rows, steps, num_blocks, needs_mask):
    c = pl.program_id(0)      # "parallel" core-split axis
    s = pl.program_id(1)      # "arbitrary" reduction axis

    @pl.when(s == 0)
    def _init():
        o_ref[...] = jnp.zeros_like(o_ref)

    # Cast to f32 on-chip (free relative to DMA; halves HBM bytes for bf16).
    x = x_ref[...].astype(jnp.float32)                    # (tile_rows, 128)
    per = _elementwise_loss(x, gan_type, target_val, sign)

    def _accum(vals):
        # Fold the tile into one (8,128) vreg with pure VPU adds; the XLU
        # cross-lane/sublane reduce is deferred to the wrapper's tiny jnp.sum.
        o_ref[...] += vals.reshape(tile_rows // 8, 8, _LANES).sum(axis=0)

    if not needs_mask:
        _accum(per)                                       # steady-state hot path
    else:
        blk = c * steps + s
        # Only the (single) partial boundary block and any clamped duplicate
        # block need row masking; everything else takes the unmasked path.
        first_masked = num_blocks - 1 if (rows % tile_rows) else num_blocks

        @pl.when(blk < first_masked)
        def _hot():
            _accum(per)

        @pl.when(blk >= first_masked)
        def _edge():
            row = jax.lax.broadcasted_iota(jnp.int32, per.shape, 0)
            valid = (blk * tile_rows + row) < rows
            _accum(jnp.where(valid, per, 0.0))


# ---------------------------------------------------------------------------
# Wrapper: GANLoss.forward(input, target_is_real)
# ---------------------------------------------------------------------------

def gan_loss(x, target_is_real, *, gan_type="gan",
             real_label_val=1.0, fake_label_val=0.0):
    gan_type = gan_type.lower()
    if gan_type not in ("gan", "ragan", "lsgan", "wgan-gp"):
        raise NotImplementedError(
            "GAN type [{:s}] is not found".format(gan_type))

    # Like the PyTorch module, `target_is_real` is a static Python flag.
    target_is_real = bool(target_is_real)
    if gan_type == "wgan-gp":
        target_val = 0.0
        sign = -1.0 if target_is_real else 1.0
    else:
        target_val = float(real_label_val if target_is_real else fake_label_val)
        sign = 1.0

    x_flat = jnp.ravel(x)                 # native dtype; cast happens in-kernel
    n = int(x_flat.shape[0])
    if n == 0:
        return jnp.float32(0.0)

    rows = n // _LANES
    rem = n - rows * _LANES               # < 128 leftover elements

    total = jnp.float32(0.0)

    if rows > 0:
        # Lane-dense (rows, 128) view; a free bitcast when n % 128 == 0.
        x_main = x_flat[:rows * _LANES].reshape(rows, _LANES)

        tile_rows = min(_MAX_TILE_ROWS, ((rows + 7) // 8) * 8)  # sublane aligned
        num_blocks = -(-rows // tile_rows)
        ncores = 2 if num_blocks >= 2 else 1   # v7x 2-TC split; harmless on 1-TC
        steps = -(-num_blocks // ncores)
        needs_mask = (rows % tile_rows != 0) or (ncores * steps > num_blocks)

        if gan_type in ("gan", "ragan"):
            flops, transcendentals = 5 * n, 2 * n
        elif gan_type == "lsgan":
            flops, transcendentals = 3 * n, 0
        else:
            flops, transcendentals = 2 * n, 0
        cost = pl.CostEstimate(
            flops=flops, transcendentals=transcendentals,
            bytes_accessed=x_main.size * x_main.dtype.itemsize
                           + ncores * 8 * _LANES * 4)

        partials = pl.pallas_call(
            functools.partial(
                _gan_partial_kernel, gan_type=gan_type, target_val=target_val,
                sign=sign, rows=rows, tile_rows=tile_rows, steps=steps,
                num_blocks=num_blocks, needs_mask=needs_mask),
            out_shape=jax.ShapeDtypeStruct((ncores, 8, _LANES), jnp.float32),
            grid=(ncores, steps),
            in_specs=[pl.BlockSpec(
                (tile_rows, _LANES),
                lambda c, s: (jnp.minimum(c * steps + s, num_blocks - 1), 0))],
            out_specs=pl.BlockSpec((None, 8, _LANES), lambda c, s: (c, 0, 0)),
            compiler_params=pltpu.CompilerParams(
                dimension_semantics=("parallel", "arbitrary")),
            cost_estimate=cost,
        )(x_main)
        total = total + jnp.sum(partials)

    if rem > 0:
        # < 128 leftover elements: negligible, folded in with plain JAX so the
        # kernel's hot loop never needs a pad copy or a per-element mask.
        tail = x_flat[rows * _LANES:].astype(jnp.float32)
        total = total + jnp.sum(_elementwise_loss(tail, gan_type, target_val, sign))

    return total / jnp.float32(n)


class GANLoss:
    """Mirror of the PyTorch GANLoss module (forward pass only)."""

    def __init__(self, gan_type, real_label_val=1.0, fake_label_val=0.0):
        self.gan_type = gan_type.lower()
        self.real_label_val = real_label_val
        self.fake_label_val = fake_label_val
        if self.gan_type not in ("gan", "ragan", "lsgan", "wgan-gp"):
            raise NotImplementedError(
                "GAN type [{:s}] is not found".format(self.gan_type))

    def __call__(self, input, target_is_real):
        return gan_loss(input, target_is_real, gan_type=self.gan_type,
                        real_label_val=self.real_label_val,
                        fake_label_val=self.fake_label_val)


# ---------------------------------------------------------------------------
# Pure-JAX reference (mirrors the PyTorch module) for a self-check
# ---------------------------------------------------------------------------

def _reference(x, target_is_real, gan_type,
               real_label_val=1.0, fake_label_val=0.0):
    x = x.astype(jnp.float32)
    if gan_type == "wgan-gp":
        return -jnp.mean(x) if target_is_real else jnp.mean(x)
    y = real_label_val if target_is_real else fake_label_val
    if gan_type in ("gan", "ragan"):
        return jnp.mean(jnp.maximum(x, 0.0) - x * y
                        + jnp.log1p(jnp.exp(-jnp.abs(x))))
    return jnp.mean((x - y) ** 2)  # lsgan


if __name__ == "__main__":
    # Primary small input: PatchGAN-style discriminator logits.
    x = jax.random.normal(jax.random.PRNGKey(0), (2, 4, 16, 16), jnp.float32) * 3.0
    # Odd shape: exercises the boundary-masked block and the <128-element tail.
    x_odd = jax.random.normal(jax.random.PRNGKey(1), (2, 3, 17, 19), jnp.float32)
    # Larger bf16 input: exercises the multi-block / 2-core-split path and the
    # in-kernel bf16 -> f32 cast (HBM reads stay in bf16).
    x_big = jax.random.normal(jax.random.PRNGKey(2), (3, 64, 64, 64), jnp.bfloat16)

    cases = [
        (x, "gan", True), (x, "gan", False),
        (x, "ragan", True),
        (x, "lsgan", True), (x, "lsgan", False),
        (x, "wgan-gp", True), (x, "wgan-gp", False),
        (x_odd, "gan", False),
        (x_odd, "lsgan", True),
        (x_big, "gan", True),
    ]

    results = []
    for inp, gt, real in cases:
        loss = GANLoss(gt)(inp, real)
        ref = _reference(inp, real, gt)
        results.append((gt, real, loss, ref))
    jax.block_until_ready([r[2] for r in results])

    for gt, real, loss, ref in results:
        l, r = float(loss), float(ref)
        assert abs(l - r) <= 1e-3 + 1e-3 * abs(r), (gt, real, l, r)

    print("KERNEL_OK")
</pallas_src>

<mosaic_0001>
module attributes {stable_mosaic.version = 11 : i64} {
  func.func @_gan_partial_kernel(%arg0: i32, %arg1: i32, %arg2: memref<16x128xf32, #tpu.memory_space<vmem>>, %arg3: memref<1x8x128xf32, #tpu.memory_space<vmem>>) attributes {dimension_semantics = [#tpu.dimension_semantics<parallel>, #tpu.dimension_semantics<arbitrary>], iteration_bounds = array<i64: 1, 1>, scalar_prefetch = 0 : i64, scratch_operands = 0 : i64, tpu.core_type = #tpu.core_type<tc>, window_params = [{transform_indices = @transform_0, window_bounds = array<i64: 16, 128>}, {transform_indices = @transform_1, window_bounds = array<i64: 1, 8, 128>}]} {
    %c0_i32 = arith.constant 0 : i32
    %0 = arith.cmpi eq, %arg1, %c0_i32 : i32
    %1 = arith.extui %0 : i1 to i32
    %c0_i32_0 = arith.constant 0 : i32
    %2 = arith.cmpi ne, %1, %c0_i32_0 : i32
    scf.if %2 {
      %cst_12 = arith.constant 0.000000e+00 : f32
      %24 = vector.broadcast %cst_12 : f32 to vector<8x128xf32>
      %c0_13 = arith.constant 0 : index
      %c0_14 = arith.constant 0 : index
      %c0_15 = arith.constant 0 : index
      %25 = vector.load %arg3[%c0_13, %c0_14, %c0_15] : memref<1x8x128xf32, #tpu.memory_space<vmem>>, vector<1x8x128xf32>
      %26 = vector.shape_cast %25 : vector<1x8x128xf32> to vector<8x128xf32>
      %27 = vector.shape_cast %24 : vector<8x128xf32> to vector<1x8x128xf32>
      tpu.vector_store %arg3[%c0_13, %c0_14, %c0_15], %27 {strides = array<i32>} : memref<1x8x128xf32, #tpu.memory_space<vmem>>, vector<1x8x128xf32>,
    } else {
    }
    %c0 = arith.constant 0 : index
    %c0_1 = arith.constant 0 : index
    %3 = vector.load %arg2[%c0, %c0_1] : memref<16x128xf32, #tpu.memory_space<vmem>>, vector<16x128xf32>
    %cst = arith.constant 0.000000e+00 : f32
    %4 = vector.broadcast %cst : f32 to vector<16x128xf32>
    %5 = arith.subf %4, %3 : vector<16x128xf32>
    %cst_2 = arith.constant 0.000000e+00 : f32
    %6 = vector.broadcast %cst_2 : f32 to vector<16x128xf32>
    %7 = arith.maximumf %5, %6 : vector<16x128xf32>
    %8 = math.absf %5 : vector<16x128xf32>
    %cst_3 = arith.constant 0.000000e+00 : f32
    %9 = vector.broadcast %cst_3 : f32 to vector<16x128xf32>
    %10 = arith.subf %9, %8 : vector<16x128xf32>
    %11 = math.exp %10 : vector<16x128xf32>
    %cst_4 = arith.constant 1.000000e+00 : f32
    %12 = vector.broadcast %cst_4 : f32 to vector<16x128xf32>
    %13 = arith.addf %12, %11 : vector<16x128xf32>
    %14 = math.log %13 : vector<16x128xf32>
    %15 = arith.addf %7, %14 : vector<16x128xf32>
    %c0_5 = arith.constant 0 : index
    %c0_6 = arith.constant 0 : index
    %c0_7 = arith.constant 0 : index
    %16 = vector.load %arg3[%c0_5, %c0_6, %c0_7] : memref<1x8x128xf32, #tpu.memory_space<vmem>>, vector<1x8x128xf32>
    %17 = vector.shape_cast %16 : vector<1x8x128xf32> to vector<8x128xf32>
    %18 = vector.shape_cast %15 : vector<16x128xf32> to vector<2x8x128xf32>
    %cst_8 = arith.constant dense<0.000000e+00> : vector<8x128xf32>
    %19 = vector.multi_reduction <add>, %18, %cst_8 [0] : vector<2x8x128xf32> to vector<8x128xf32>
    %20 = arith.addf %17, %19 : vector<8x128xf32>
    %c0_9 = arith.constant 0 : index
    %c0_10 = arith.constant 0 : index
    %c0_11 = arith.constant 0 : index
    %21 = vector.load %arg3[%c0_9, %c0_10, %c0_11] : memref<1x8x128xf32, #tpu.memory_space<vmem>>, vector<1x8x128xf32>
    %22 = vector.shape_cast %21 : vector<1x8x128xf32> to vector<8x128xf32>
    %23 = vector.shape_cast %20 : vector<8x128xf32> to vector<1x8x128xf32>
    tpu.vector_store %arg3[%c0_9, %c0_10, %c0_11], %23 {strides = array<i32>} : memref<1x8x128xf32, #tpu.memory_space<vmem>>, vector<1x8x128xf32>,
    return
  }
  func.func @transform_0(%arg0: i32, %arg1: i32) -> (i32, i32) {
    %c1_i32 = arith.constant 1 : i32
    %0 = arith.muli %arg0, %c1_i32 : i32
    %1 = arith.addi %0, %arg1 : i32
    %c0_i32 = arith.constant 0 : i32
    %2 = arith.minsi %1, %c0_i32 : i32
    %c0_i32_0 = arith.constant 0 : i32
    %c0_i32_1 = arith.constant 0 : i32
    return %2, %c0_i32_0 : i32, i32
  }
  func.func @transform_1(%arg0: i32, %arg1: i32) -> (i32, i32, i32) {
    %c0_i32 = arith.constant 0 : i32
    %c0_i32_0 = arith.constant 0 : i32
    %c0_i32_1 = arith.constant 0 : i32
    return %arg0, %c0_i32, %c0_i32_0 : i32, i32, i32
  }
}

</mosaic_0001>

<llo_original>
// kernel: tpu_custom_call.1
$region0: #{tpu_custom_call.1}
  #allocation0 [shape = 'u32[]', space=smem, size = 0x4, offset = 0x4, fixed_abs, tag = 'smem constant byte address 0x4 - core index']
  #allocation1 [shape = 'u32[72,128]{1,0:T(1,128)}', space=vmem, size = 0x9000, scoped, tag = 'internal scratch']
  %s0 = inlined_call_operand.hbm [shape: f32[16,128], index: 0, kind: input, shape index: {}]
  %s1 = inlined_call_operand.hbm [shape: f32[1,8,128], index: 1, kind: output, shape index: {}]
  %s2 = sld [smem:[#allocation0]]
  $region22: #{tpu_custom_call.1} parent=0
    _
  %s4 = ssub.s32 1, %s2
  %s5 = scalar_select 0, %s4, %s2
  $region1: #{tpu_custom_call.1} parent=0
    #allocation2 [shape = 'u8[8192]{0}', space=vmem, size = 0x2000, scoped, tag = 'input window, operand 0, single buffered']
    #allocation3 [shape = 's32[1]{0}', space=sflag, size = 0x4, scoped, tag = 'scoped memory for tpu_custom_call.1']
    #allocation4 [shape = 's32[1]{0}', space=sflag, size = 0x4, scoped, tag = 'scoped memory for tpu_custom_call.1']
    #allocation5 [shape = 'u8[4096]{0}', space=vmem, size = 0x1000, scoped, tag = 'output window, operand 0, single buffered']
    %6 = vsyncpa [#allocation3], 0
    %7 = vsyncpa [#allocation4], 0
    // Predicated region
    $region2: #{tpu_custom_call.1} parent=1 // pred_check
      _
    $region3: #{tpu_custom_call.1} parent=1 // pred_check_branch
      %9 = sbr.rel (0) target = $region5
    $region4: #{tpu_custom_call.1} parent=1 // pred_region
      %s10 = sadd.s32 0, 0
      %p11 = scmp.lt.s32.totalorder %s10, 0
      %s12 = scalar_select %p11, %s10, 0
      %s13 = smul.u32 2, %s12
      %15 = vsyncadd [#allocation3], 0
      %s16 = smul.addr %s13, 8
      %s17 = scalar_lea.hbm %s0, %s16
      %s18 = sshll.u32 %s17, 4
      %s19 = int_to_ptr.hbm [resolvable:$true] %s18
      %s20 = sshll.u32 [#allocation2], 4
      %s21 = int_to_ptr.vmem [resolvable:$true] %s20
      %26 = dma.hbm_to_vmem [thread:$0]  %s19, 256, %s21, [#allocation3], 128, 128, 8
    $region5: #{tpu_custom_call.1} parent=1 // pred_fallthru
      _
    // Predicated region
    $region6: #{tpu_custom_call.1} parent=1 // pred_check
      _
    $region7: #{tpu_custom_call.1} parent=1 // pred_check_branch
      %28 = sbr.rel (0) target = $region9
    $region8: #{tpu_custom_call.1} parent=1 // pred_region
      %30 = dma.done [#allocation3], 256
    $region9: #{tpu_custom_call.1} parent=1 // pred_fallthru
      _
    %s31 = sadd.s32 0, 0
    %p32 = scmp.lt.s32.totalorder %s31, 0
    %s33 = scalar_select %p32, %s31, 0
    %s34 = smul.u32 2, %s33
    %p35 = scmp.eq.s32.totalorder 0, 0
    // Predicated region
    $region10: #{tpu_custom_call.1} parent=1 // pred_check
      %p36 = pneg %p35
    $region11: #{tpu_custom_call.1} parent=1 // pred_check_branch
      %38 = sbr.rel (%p36) target = $region13
    $region12: #{tpu_custom_call.1} parent=1 // pred_region
      %39 = vst [vmem:[#allocation5] sm:$0xff] 0.0
    $region13: #{tpu_custom_call.1} parent=1 // pred_fallthru
      _
    %v40 = vld [vmem:[#allocation2] sm:$0xff]
    %v41 = vld [vmem:[#allocation2 + $0x8] sm:$0xff]
    %v42 = vsub.f32 0.0, %v40
    %v43 = vsub.f32 0.0, %v41
    %v44 = vmax.f32 %v42, 0.0
    %v45 = vmax.f32 %v43, 0.0
    %v46 = vand.u32 2147483647, %v42
    %v47 = vand.u32 2147483647, %v43
    %v48 = vsub.f32 0.0, %v46
    %v49 = vsub.f32 0.0, %v47
    %v50 = vmul.f32 %v48, 1.442695
    %v51 = vpow.pop %v50
    %v52 = vmul.f32 %v49, 1.442695
    %v53 = vpow.pop %v52
    %v54 = vadd.f32 %v51, 1.0
    %v55 = vadd.f32 %v53, 1.0
    %v56 = vlog2.pop %v54
    %v57 = vmul.f32 %v56, 0.6931472
    %v58 = vlog2.pop %v55
    %v59 = vmul.f32 %v58, 0.6931472
    %v60 = vadd.f32 %v44, %v57
    %v61 = vadd.f32 %v45, %v59
    %v62 = vld [vmem:[#allocation5] sm:$0xff]
    %v63 = vadd.f32 %v60, %v61
    %v64 = vadd.f32 %v62, %v63
    %65 = vst [vmem:[#allocation5] sm:$0xff] %v64
    // Predicated region
    $region14: #{tpu_custom_call.1} parent=1 // pred_check
      _
    $region15: #{tpu_custom_call.1} parent=1 // pred_check_branch
      %67 = sbr.rel (0) target = $region17
    $region16: #{tpu_custom_call.1} parent=1 // pred_region
      %69 = vsyncadd [#allocation4], 0
      %s71 = sshll.u32 [#allocation5], 4
      %s72 = int_to_ptr.vmem [resolvable:$true] %s71
      %s73 = sshll.u32 %s1, 4
      %s74 = int_to_ptr.hbm [resolvable:$true] %s73
      %76 = dma.vmem_to_hbm [thread:$0]  %s72, 128, %s74, [#allocation4]
    $region17: #{tpu_custom_call.1} parent=1 // pred_fallthru
      _
    // Predicated region
    $region18: #{tpu_custom_call.1} parent=1 // pred_check
      _
    $region19: #{tpu_custom_call.1} parent=1 // pred_check_branch
      %78 = sbr.rel (0) target = $region21
    $region20: #{tpu_custom_call.1} parent=1 // pred_region
      %80 = dma.done [#allocation4], 128
    $region21: #{tpu_custom_call.1} parent=1 // pred_fallthru
      _
    %81 = vsyncpa [#allocation3], 1
    %82 = vsyncpa [#allocation4], 1

</llo_original>
